<compile_context>
chip_gen: v7x
topology: tpu7x:2x2x1
jax: 0.10.0
libtpu: 0.0.40
codegen_flags: <defaults>
</compile_context>

<pallas_src>
import jax
import jax.numpy as jnp
from jax.experimental import pallas as pl
from jax.experimental.pallas import tpu as pltpu

_LANES = 128


def _round8(r):
    return (r + 7) // 8 * 8


def _pack_params(p, n):
    """Pack every weight and bias into one (R, 128) f32 buffer, once, at init.

    Each block starts at an 8-aligned row offset and is padded to 128 columns
    (lane-dense HBM->VMEM DMA).  Biases are pre-broadcast to >= 2n rows so the
    kernel's bias adds are plain aligned loads.  Returns (packed, {name: row}).
    """
    He = p["ew2"].shape[0]
    Dh = p["dw2"].shape[0]
    z_dim = p["ew3"].shape[1]
    br = _round8(2 * n)  # bias rows: covers the 2n stacked encoder rows

    def wblock(w):
        r, c = w.shape
        return jnp.pad(w, ((0, _round8(r) - r), (0, _LANES - c)))

    def bblock(b):
        b2 = jnp.broadcast_to(b.reshape(1, -1), (br, b.size))
        return jnp.pad(b2, ((0, 0), (0, _LANES - b.size)))

    hw = jnp.concatenate([p["mw"], p["sw"]], axis=1)   # (Dh, 2*z_dim)
    hb = jnp.concatenate([p["mb"], p["sb"]], axis=1)   # (1, 2*z_dim)

    blocks = [
        ("ew1", wblock(p["ew1"])), ("ew2", wblock(p["ew2"])), ("ew3", wblock(p["ew3"])),
        ("dwz", wblock(p["dwz"])), ("dwu", wblock(p["dwu"])),
        ("dw2", wblock(p["dw2"])), ("hw", wblock(hw)),
        ("eb1", bblock(p["eb1"])), ("eb2", bblock(p["eb2"])), ("eb3", bblock(p["eb3"])),
        ("db1", bblock(p["db1"])), ("db2", bblock(p["db2"])), ("hb", bblock(hb)),
    ]
    off, parts, r = {}, [], 0
    for name, blk in blocks:
        off[name] = r
        parts.append(blk)
        r += blk.shape[0]
    return jnp.concatenate(parts, axis=0), off


def _make_kernel(n, x_dim, z_dim, u_dim, He, Dh, off, out_w):
    two_n = 2 * n
    two_z = 2 * z_dim
    pad_cols = out_w - 4 * z_dim

    def kernel(x_ref, xn_ref, u_ref, p_ref, out_ref):
        # ---- stack [x ; x_next] in-register (no wrapper-side HBM concat) ----
        xx = jnp.concatenate([x_ref[...], xn_ref[...]], axis=0)   # (2n, x_dim)

        # ---- encoder, one pass over the stacked 2n rows ----
        h = jnp.dot(xx, p_ref[off["ew1"]:off["ew1"] + x_dim, 0:He],
                    preferred_element_type=jnp.float32)
        h = jnp.maximum(h + p_ref[off["eb1"]:off["eb1"] + two_n, 0:He], 0.0)
        h = jnp.dot(h, p_ref[off["ew2"]:off["ew2"] + He, 0:He],
                    preferred_element_type=jnp.float32)
        h = jnp.maximum(h + p_ref[off["eb2"]:off["eb2"] + two_n, 0:He], 0.0)
        ze = (jnp.dot(h, p_ref[off["ew3"]:off["ew3"] + He, 0:z_dim],
                      preferred_element_type=jnp.float32)
              + p_ref[off["eb3"]:off["eb3"] + two_n, 0:z_dim])
        z = ze[0:n, :]            # encoding of x
        z_next = ze[n:two_n, :]   # encoding of x_next

        # ---- dynamics trunk: two 8-aligned dots, no concat scratch ----
        g = (jnp.dot(z, p_ref[off["dwz"]:off["dwz"] + z_dim, 0:Dh],
                     preferred_element_type=jnp.float32)
             + jnp.dot(u_ref[...], p_ref[off["dwu"]:off["dwu"] + u_dim, 0:Dh],
                       preferred_element_type=jnp.float32)
             + p_ref[off["db1"]:off["db1"] + n, 0:Dh])
        g = jnp.maximum(g, 0.0)
        g = jnp.dot(g, p_ref[off["dw2"]:off["dw2"] + Dh, 0:Dh],
                    preferred_element_type=jnp.float32)
        g = jnp.maximum(g + p_ref[off["db2"]:off["db2"] + n, 0:Dh], 0.0)

        # ---- fused mean | logstd head (one MXU push) ----
        ms = (jnp.dot(g, p_ref[off["hw"]:off["hw"] + Dh, 0:two_z],
                      preferred_element_type=jnp.float32)
              + p_ref[off["hb"]:off["hb"] + n, 0:two_z])
        mean = ms[:, 0:z_dim] + z           # residual mean
        std = jnp.exp(ms[:, z_dim:two_z])   # std = exp(logstd)

        # ---- single unmasked lane-dense store: [z | mean | std | z_next | 0] ----
        pieces = [z, mean, std, z_next]
        if pad_cols > 0:
            pieces.append(jnp.zeros((n, pad_cols), jnp.float32))
        out_ref[...] = jnp.concatenate(pieces, axis=-1)

    return kernel


def build_pc3_forward(params, n):
    """Pack params once and return a jitted forward(x, u, x_next)."""
    x_dim, He = params["ew1"].shape
    Dh = params["dw2"].shape[0]
    z_dim = params["ew3"].shape[1]
    u_dim = params["dwu"].shape[0]
    out_w = max(_LANES, ((4 * z_dim + _LANES - 1) // _LANES) * _LANES)

    packed, off = _pack_params(params, n)
    kernel = _make_kernel(n, x_dim, z_dim, u_dim, He, Dh, off, out_w)
    vmem = pl.BlockSpec(memory_space=pltpu.MemorySpace.VMEM)

    flops = (2 * (2 * n) * (x_dim * He + He * He + He * z_dim)
             + 2 * n * ((z_dim + u_dim) * Dh + Dh * Dh + Dh * 2 * z_dim))
    bytes_accessed = 4 * (2 * n * x_dim + n * u_dim + int(packed.size) + n * out_w)
    cost = pl.CostEstimate(flops=flops, transcendentals=n * z_dim,
                           bytes_accessed=bytes_accessed)

    call = pl.pallas_call(
        kernel,
        out_shape=jax.ShapeDtypeStruct((n, out_w), jnp.float32),
        in_specs=[vmem, vmem, vmem, vmem],
        out_specs=vmem,
        cost_estimate=cost,
    )

    @jax.jit
    def forward(x, u, x_next):
        out = call(x, x_next, u, packed)
        z_enc = out[:, 0:z_dim]
        mean = out[:, z_dim:2 * z_dim]
        std = out[:, 2 * z_dim:3 * z_dim]
        z_next_enc = out[:, 3 * z_dim:4 * z_dim]
        return z_enc, (mean, std), z_next_enc

    return forward


def init_params(key, x_dim, z_dim, u_dim, enc_hidden=32, dyn_hidden=32):
    def lin(k, fan_in, fan_out):
        kw, kb = jax.random.split(k)
        s = 1.0 / jnp.sqrt(fan_in)
        w = jax.random.uniform(kw, (fan_in, fan_out), jnp.float32, -s, s)
        b = jax.random.uniform(kb, (1, fan_out), jnp.float32, -s, s)
        return w, b

    ks = jax.random.split(key, 8)
    p = {}
    p["ew1"], p["eb1"] = lin(ks[0], x_dim, enc_hidden)
    p["ew2"], p["eb2"] = lin(ks[1], enc_hidden, enc_hidden)
    p["ew3"], p["eb3"] = lin(ks[2], enc_hidden, z_dim)
    # dynamics first layer on concat(z, u): stored split, used as two dots
    wzu, p["db1"] = lin(ks[3], z_dim + u_dim, dyn_hidden)
    p["dwz"], p["dwu"] = wzu[:z_dim], wzu[z_dim:]
    p["dw2"], p["db2"] = lin(ks[4], dyn_hidden, dyn_hidden)
    p["mw"], p["mb"] = lin(ks[5], dyn_hidden, z_dim)
    p["sw"], p["sb"] = lin(ks[6], dyn_hidden, z_dim)
    return p


def pc3_forward_ref(x, u, x_next, p):
    def enc(xr):
        h = jnp.maximum(xr @ p["ew1"] + p["eb1"], 0.0)
        h = jnp.maximum(h @ p["ew2"] + p["eb2"], 0.0)
        return h @ p["ew3"] + p["eb3"]

    z = enc(x)
    zn = enc(x_next)
    h = jnp.maximum(z @ p["dwz"] + u @ p["dwu"] + p["db1"], 0.0)
    h = jnp.maximum(h @ p["dw2"] + p["db2"], 0.0)
    mean = h @ p["mw"] + p["mb"] + z
    std = jnp.exp(h @ p["sw"] + p["sb"])
    return z, (mean, std), zn


if __name__ == "__main__":
    # small shapes: batch=8, image 1x8x8 -> x_dim=64, z_dim=8, u_dim=4
    batch, x_dim, z_dim, u_dim = 8, 64, 8, 4

    key = jax.random.PRNGKey(0)
    k_x, k_u, k_xn, k_p = jax.random.split(key, 4)
    x = jax.random.normal(k_x, (batch, x_dim), jnp.float32)       # flattened NCHW image
    u = jax.random.normal(k_u, (batch, u_dim), jnp.float32)
    x_next = jax.random.normal(k_xn, (batch, x_dim), jnp.float32)
    params = init_params(k_p, x_dim, z_dim, u_dim)

    pc3_forward = build_pc3_forward(params, batch)   # packs params ONCE
    z_enc, (mean, std), z_next_enc = jax.block_until_ready(
        pc3_forward(x, u, x_next)
    )

    # correctness check against plain-JAX reference
    z_r, (m_r, s_r), zn_r = pc3_forward_ref(x, u, x_next, params)
    assert jnp.allclose(z_enc, z_r, atol=1e-5)
    assert jnp.allclose(mean, m_r, atol=1e-5)
    assert jnp.allclose(std, s_r, atol=1e-5)
    assert jnp.allclose(z_next_enc, zn_r, atol=1e-5)

    # TODO(synk): reparam() (torch.randn_like sampling) is not part of forward();
    # the transition distribution is returned as the (mean, std) pair.
    print("KERNEL_OK")
</pallas_src>

<mosaic_0001>
module attributes {stable_mosaic.version = 11 : i64} {
  func.func @kernel(%arg0: memref<8x64xf32, #tpu.memory_space<vmem>>, %arg1: memref<8x64xf32, #tpu.memory_space<vmem>>, %arg2: memref<8x4xf32, #tpu.memory_space<vmem>>, %arg3: memref<304x128xf32, #tpu.memory_space<vmem>>, %arg4: memref<8x128xf32, #tpu.memory_space<vmem>>) attributes {dimension_semantics = [], scalar_prefetch = 0 : i64, scratch_operands = 0 : i64, tpu.core_type = #tpu.core_type<tc>} {
    %c0 = arith.constant 0 : index
    %c0_0 = arith.constant 0 : index
    %0 = vector.load %arg0[%c0, %c0_0] : memref<8x64xf32, #tpu.memory_space<vmem>>, vector<8x64xf32>
    %c0_1 = arith.constant 0 : index
    %c0_2 = arith.constant 0 : index
    %1 = vector.load %arg1[%c0_1, %c0_2] : memref<8x64xf32, #tpu.memory_space<vmem>>, vector<8x64xf32>
    %2 = tpu.concatenate %0, %1 in 0 : vector<8x64xf32>, vector<8x64xf32> -> vector<16x64xf32>
    %c0_3 = arith.constant 0 : index
    %c0_4 = arith.constant 0 : index
    %3 = vector.load %arg3[%c0_3, %c0_4] : memref<304x128xf32, #tpu.memory_space<vmem>>, vector<64x32xf32>
    %cst = arith.constant dense<0.000000e+00> : vector<16x32xf32>
    %4 = tpu.matmul %2, %3, %cst {dimension_numbers = #tpu.dot_dimension_numbers<[1], [0], [0], [1], [0, 0, 1, 1], [], []>} : vector<16x64xf32>, vector<64x32xf32>, vector<16x32xf32> -> vector<16x32xf32>
    %c208 = arith.constant 208 : index
    %c0_5 = arith.constant 0 : index
    %5 = vector.load %arg3[%c208, %c0_5] : memref<304x128xf32, #tpu.memory_space<vmem>>, vector<16x32xf32>
    %6 = arith.addf %4, %5 : vector<16x32xf32>
    %cst_6 = arith.constant 0.000000e+00 : f32
    %7 = vector.broadcast %cst_6 : f32 to vector<16x32xf32>
    %8 = arith.maximumf %6, %7 : vector<16x32xf32>
    %c64 = arith.constant 64 : index
    %c0_7 = arith.constant 0 : index
    %9 = vector.load %arg3[%c64, %c0_7] : memref<304x128xf32, #tpu.memory_space<vmem>>, vector<32x32xf32>
    %cst_8 = arith.constant dense<0.000000e+00> : vector<16x32xf32>
    %10 = tpu.matmul %8, %9, %cst_8 {dimension_numbers = #tpu.dot_dimension_numbers<[1], [0], [0], [1], [0, 0, 1, 1], [], []>} : vector<16x32xf32>, vector<32x32xf32>, vector<16x32xf32> -> vector<16x32xf32>
    %c224 = arith.constant 224 : index
    %c0_9 = arith.constant 0 : index
    %11 = vector.load %arg3[%c224, %c0_9] : memref<304x128xf32, #tpu.memory_space<vmem>>, vector<16x32xf32>
    %12 = arith.addf %10, %11 : vector<16x32xf32>
    %cst_10 = arith.constant 0.000000e+00 : f32
    %13 = vector.broadcast %cst_10 : f32 to vector<16x32xf32>
    %14 = arith.maximumf %12, %13 : vector<16x32xf32>
    %c96 = arith.constant 96 : index
    %c0_11 = arith.constant 0 : index
    %15 = vector.load %arg3[%c96, %c0_11] : memref<304x128xf32, #tpu.memory_space<vmem>>, vector<32x8xf32>
    %cst_12 = arith.constant dense<0.000000e+00> : vector<16x8xf32>
    %16 = tpu.matmul %14, %15, %cst_12 {dimension_numbers = #tpu.dot_dimension_numbers<[1], [0], [0], [1], [0, 0, 1, 1], [], []>} : vector<16x32xf32>, vector<32x8xf32>, vector<16x8xf32> -> vector<16x8xf32>
    %c240 = arith.constant 240 : index
    %c0_13 = arith.constant 0 : index
    %17 = vector.load %arg3[%c240, %c0_13] : memref<304x128xf32, #tpu.memory_space<vmem>>, vector<16x8xf32>
    %18 = arith.addf %16, %17 : vector<16x8xf32>
    %19 = vector.extract_strided_slice %18 {offsets = [0, 0], sizes = [8, 8], strides = [1, 1]} : vector<16x8xf32> to vector<8x8xf32>
    %20 = vector.extract_strided_slice %18 {offsets = [8, 0], sizes = [8, 8], strides = [1, 1]} : vector<16x8xf32> to vector<8x8xf32>
    %c128 = arith.constant 128 : index
    %c0_14 = arith.constant 0 : index
    %21 = vector.load %arg3[%c128, %c0_14] : memref<304x128xf32, #tpu.memory_space<vmem>>, vector<8x32xf32>
    %cst_15 = arith.constant dense<0.000000e+00> : vector<8x32xf32>
    %22 = tpu.matmul %19, %21, %cst_15 {dimension_numbers = #tpu.dot_dimension_numbers<[1], [0], [0], [1], [0, 0, 1, 1], [], []>} : vector<8x8xf32>, vector<8x32xf32>, vector<8x32xf32> -> vector<8x32xf32>
    %c0_16 = arith.constant 0 : index
    %c0_17 = arith.constant 0 : index
    %23 = vector.load %arg2[%c0_16, %c0_17] : memref<8x4xf32, #tpu.memory_space<vmem>>, vector<8x4xf32>
    %c136 = arith.constant 136 : index
    %c0_18 = arith.constant 0 : index
    %24 = vector.load %arg3[%c136, %c0_18] : memref<304x128xf32, #tpu.memory_space<vmem>>, vector<4x32xf32>
    %cst_19 = arith.constant dense<0.000000e+00> : vector<8x32xf32>
    %25 = tpu.matmul %23, %24, %cst_19 {dimension_numbers = #tpu.dot_dimension_numbers<[1], [0], [0], [1], [0, 0, 1, 1], [], []>} : vector<8x4xf32>, vector<4x32xf32>, vector<8x32xf32> -> vector<8x32xf32>
    %26 = arith.addf %22, %25 : vector<8x32xf32>
    %c256 = arith.constant 256 : index
    %c0_20 = arith.constant 0 : index
    %27 = vector.load %arg3[%c256, %c0_20] : memref<304x128xf32, #tpu.memory_space<vmem>>, vector<8x32xf32>
    %28 = arith.addf %26, %27 : vector<8x32xf32>
    %cst_21 = arith.constant 0.000000e+00 : f32
    %29 = vector.broadcast %cst_21 : f32 to vector<8x32xf32>
    %30 = arith.maximumf %28, %29 : vector<8x32xf32>
    %c144 = arith.constant 144 : index
    %c0_22 = arith.constant 0 : index
    %31 = vector.load %arg3[%c144, %c0_22] : memref<304x128xf32, #tpu.memory_space<vmem>>, vector<32x32xf32>
    %cst_23 = arith.constant dense<0.000000e+00> : vector<8x32xf32>
    %32 = tpu.matmul %30, %31, %cst_23 {dimension_numbers = #tpu.dot_dimension_numbers<[1], [0], [0], [1], [0, 0, 1, 1], [], []>} : vector<8x32xf32>, vector<32x32xf32>, vector<8x32xf32> -> vector<8x32xf32>
    %c272 = arith.constant 272 : index
    %c0_24 = arith.constant 0 : index
    %33 = vector.load %arg3[%c272, %c0_24] : memref<304x128xf32, #tpu.memory_space<vmem>>, vector<8x32xf32>
    %34 = arith.addf %32, %33 : vector<8x32xf32>
    %cst_25 = arith.constant 0.000000e+00 : f32
    %35 = vector.broadcast %cst_25 : f32 to vector<8x32xf32>
    %36 = arith.maximumf %34, %35 : vector<8x32xf32>
    %c176 = arith.constant 176 : index
    %c0_26 = arith.constant 0 : index
    %37 = vector.load %arg3[%c176, %c0_26] : memref<304x128xf32, #tpu.memory_space<vmem>>, vector<32x16xf32>
    %cst_27 = arith.constant dense<0.000000e+00> : vector<8x16xf32>
    %38 = tpu.matmul %36, %37, %cst_27 {dimension_numbers = #tpu.dot_dimension_numbers<[1], [0], [0], [1], [0, 0, 1, 1], [], []>} : vector<8x32xf32>, vector<32x16xf32>, vector<8x16xf32> -> vector<8x16xf32>
    %c288 = arith.constant 288 : index
    %c0_28 = arith.constant 0 : index
    %39 = vector.load %arg3[%c288, %c0_28] : memref<304x128xf32, #tpu.memory_space<vmem>>, vector<8x16xf32>
    %40 = arith.addf %38, %39 : vector<8x16xf32>
    %41 = vector.extract_strided_slice %40 {offsets = [0, 0], sizes = [8, 8], strides = [1, 1]} : vector<8x16xf32> to vector<8x8xf32>
    %42 = arith.addf %41, %19 : vector<8x8xf32>
    %43 = vector.extract_strided_slice %40 {offsets = [0, 8], sizes = [8, 8], strides = [1, 1]} : vector<8x16xf32> to vector<8x8xf32>
    %44 = math.exp %43 : vector<8x8xf32>
    %cst_29 = arith.constant 0.000000e+00 : f32
    %45 = vector.broadcast %cst_29 : f32 to vector<8x96xf32>
    %46 = tpu.concatenate %19, %42, %44, %20, %45 in 1 : vector<8x8xf32>, vector<8x8xf32>, vector<8x8xf32>, vector<8x8xf32>, vector<8x96xf32> -> vector<8x128xf32>
    %c0_30 = arith.constant 0 : index
    %c0_31 = arith.constant 0 : index
    %47 = vector.load %arg4[%c0_30, %c0_31] : memref<8x128xf32, #tpu.memory_space<vmem>>, vector<8x128xf32>
    tpu.vector_store %arg4[%c0_30, %c0_31], %46 {strides = array<i32>} : memref<8x128xf32, #tpu.memory_space<vmem>>, vector<8x128xf32>,
    return
  }
}

</mosaic_0001>

<llo_original>
// kernel: forward.1
$region0: #{forward.1}
  #allocation0 [shape = 'u32[]', space=smem, size = 0x4, offset = 0x4, fixed_abs, tag = 'smem constant byte address 0x4 - core index']
  #allocation1 [shape = 'u32[144,128]{1,0:T(1,128)}', space=vmem, size = 0x12000, scoped, tag = 'internal scratch']
  %s0 = inlined_call_operand.vmem [shape: f32[8,64], index: 0, kind: input, shape index: {}]
  %s1 = inlined_call_operand.vmem [shape: f32[8,64], index: 1, kind: input, shape index: {}]
  %s2 = inlined_call_operand.vmem [shape: f32[8,4], index: 2, kind: input, shape index: {}]
  %s3 = inlined_call_operand.hbm [shape: f32[304,128], index: 3, kind: input, shape index: {}]
  %s4 = inlined_call_operand.vmem [shape: f32[8,128], index: 4, kind: output, shape index: {}]
  %s5 = sld [smem:[#allocation0]]
  $region30: #{forward.1} parent=0
    _
  %s7 = ssub.s32 1, %s5
  %s8 = scalar_select 0, %s7, %s5
  $region1: #{forward.1} parent=0
    #allocation2 [shape = 'u8[155648]{0}', space=vmem, size = 0x26000, scoped, tag = 'input window, operand 3, single buffered']
    #allocation3 [shape = 's32[1]{0}', space=sflag, size = 0x4, scoped, tag = 'scoped memory for forward.1']
    %9 = vsyncpa [#allocation3], 0
    // Predicated region
    $region2: #{forward.1} parent=1 // pred_check
      _
    $region3: #{forward.1} parent=1 // pred_check_branch
      %11 = sbr.rel (0) target = $region5
    $region4: #{forward.1} parent=1 // pred_region
      _
    $region5: #{forward.1} parent=1 // pred_fallthru
      _
    // Predicated region
    $region6: #{forward.1} parent=1 // pred_check
      _
    $region7: #{forward.1} parent=1 // pred_check_branch
      %13 = sbr.rel (0) target = $region9
    $region8: #{forward.1} parent=1 // pred_region
      _
    $region9: #{forward.1} parent=1 // pred_fallthru
      _
    // Predicated region
    $region10: #{forward.1} parent=1 // pred_check
      _
    $region11: #{forward.1} parent=1 // pred_check_branch
      %15 = sbr.rel (0) target = $region13
    $region12: #{forward.1} parent=1 // pred_region
      _
    $region13: #{forward.1} parent=1 // pred_fallthru
      _
    // Predicated region
    $region14: #{forward.1} parent=1 // pred_check
      _
    $region15: #{forward.1} parent=1 // pred_check_branch
      %17 = sbr.rel (0) target = $region17
    $region16: #{forward.1} parent=1 // pred_region
      %s19 = ssub.s32 4864, 4864
      %20 = vsyncadd [#allocation3], %s19
      %s21 = sshll.u32 [#allocation2], 4
      %s22 = int_to_ptr.vmem [resolvable:$true] %s21
      %27 = dma.hbm_to_vmem [thread:$0]  %s3, 4864, %s22, [#allocation3], 128, 128, 8
    $region17: #{forward.1} parent=1 // pred_fallthru
      _
    // Predicated region
    $region18: #{forward.1} parent=1 // pred_check
      _
    $region19: #{forward.1} parent=1 // pred_check_branch
      %29 = sbr.rel (0) target = $region21
    $region20: #{forward.1} parent=1 // pred_region
      %30 = dma.done [#allocation3], 4864
    $region21: #{forward.1} parent=1 // pred_fallthru
      _
    %v31 = vld [vmem:[%s0] sm:$0xff]
    %v32 = vld [vmem:[%s1] sm:$0xff]
    %v33 = vld [vmem:[#allocation2] sm:$0xff]
    %v34 = vld [vmem:[#allocation2 + $0x8] sm:$0xff]
    %v35 = vld [vmem:[#allocation2 + $0x10] sm:$0xff]
    %v36 = vld [vmem:[#allocation2 + $0x18] sm:$0xff]
    %v37 = vld [vmem:[#allocation2 + $0x20] sm:$0xff]
    %v38 = vld [vmem:[#allocation2 + $0x28] sm:$0xff]
    %v39 = vld [vmem:[#allocation2 + $0x30] sm:$0xff]
    %v40 = vld [vmem:[#allocation2 + $0x38] sm:$0xff]
    %v41 = vld [vmem:[#allocation2 + $0xd0] sm:$0xff]
    %v42 = vld [vmem:[#allocation2 + $0xd8] sm:$0xff]
    %vm43 = vcmask 523264
    %v45 = vsel %vm43, %v31, 0
    %v48 = vsel %vm43, %v32, 0
    %50 = vmatprep.subr.mxu0 0.0
    %51 = vmatpush1.msra.mxu0 %v33
    %52 = vmatprep.subr.mxu0 0.0
    %53 = vmatpush1.msra.mxu0 %v34
    %54 = vmatprep.subr.mxu0 0.0
    %55 = vmatpush1.msra.mxu0 %v35
    %56 = vmatprep.subr.mxu0 0.0
    %57 = vmatpush1.msra.mxu0 %v36
    %58 = vmatprep.subr.mxu0 0.0
    %59 = vmatpush1.msra.mxu0 %v37
    %60 = vmatprep.subr.mxu0 0.0
    %61 = vmatpush1.msra.mxu0 %v38
    %62 = vmatprep.subr.mxu0 0.0
    %63 = vmatpush1.msra.mxu0 %v39
    %64 = vmatprep.subr.mxu0 0.0
    %65 = vmatpush1.msra.mxu0 %v40
    %66 = vmatprep.subr.mxu0 0.0
    %67 = vmatpush1.msra.mxu0 0.0
    %68 = vmatprep.subr.mxu0 0.0
    %69 = vmatpush1.msra.mxu0 0.0
    %70 = vmatprep.subr.mxu0 0.0
    %71 = vmatpush1.msra.mxu0 0.0
    %72 = vmatprep.subr.mxu0 0.0
    %73 = vmatpush1.msra.mxu0 0.0
    %74 = vmatprep.subr.mxu0 0.0
    %75 = vmatpush1.msra.mxu0 0.0
    %76 = vmatprep.subr.mxu0 0.0
    %77 = vmatpush1.msra.mxu0 0.0
    %78 = vmatprep.subr.mxu0 0.0
    %79 = vmatpush1.msra.mxu0 0.0
    %80 = vmatprep.subr.mxu0 0.0
    %81 = vmatpush1.msra.mxu0 0.0
    %82 = vmatprep.subr.mxu0 0.0
    %83 = vmatpush1.msra.mxu0 0.0
    %84 = vmatprep.subr.mxu0 0.0
    %85 = vmatpush1.msra.mxu0 0.0
    %86 = vmatprep.subr.mxu0 0.0
    %87 = vmatpush1.msra.mxu0 0.0
    %88 = vmatprep.subr.mxu0 0.0
    %89 = vmatpush1.msra.mxu0 0.0
    %90 = vmatprep.subr.mxu0 0.0
    %91 = vmatpush1.msra.mxu0 0.0
    %92 = vmatprep.subr.mxu0 0.0
    %93 = vmatpush1.msra.mxu0 0.0
    %94 = vmatprep.subr.mxu0 0.0
    %95 = vmatpush1.msra.mxu0 0.0
    %96 = vmatprep.subr.mxu0 0.0
    %97 = vmatpush1.msra.mxu0 0.0
    %98 = vmatprep.subr.mxu0 0.0
    %99 = vmatpush1.msra.mxu0 0.0
    %100 = vmatprep.subr.mxu0 0.0
    %101 = vmatpush1.msra.mxu0 0.0
    %102 = vmatprep.subr.mxu0 0.0
    %103 = vmatpush1.msra.mxu0 0.0
    %104 = vmatprep.subr.mxu0 0.0
    %105 = vmatpush1.msra.mxu0 0.0
    %106 = vmatprep.subr.mxu0 0.0
    %107 = vmatpush1.msra.mxu0 0.0
    %108 = vmatprep.subr.mxu0 0.0
    %109 = vmatpush1.msra.mxu0 0.0
    %110 = vmatprep.subr.mxu0 0.0
    %111 = vmatpush1.msra.mxu0 0.0
    %112 = vmatprep.subr.mxu0 0.0
    %113 = vmatpush1.msra.mxu0 0.0
    %114 = vmatprep.mubr.f32.mxu0 0.0
    %115 = vmatmul.mubr.f32.gmra.mrb[0].mxu0 %v45
    %v116 = vpop.f32.mrb[0].mxu0
    %v117 = vadd.f32 %v41, %v116
    %v118 = vpop.f32.mrb[0].mxu0
    %119 = vmatprep.mubr.f32.mxu0 0.0
    %120 = vmatmul.mubr.f32.gmra.mrb[0].mxu0 %v48
    %v121 = vpop.f32.mrb[0].mxu0
    %v122 = vadd.f32 %v42, %v121
    %v123 = vpop.f32.mrb[0].mxu0
    %124 = vdwg.mxu0
    %v125 = vmax.f32 %v117, 0.0
    %v126 = vmax.f32 %v122, 0.0
    %v127 = vld [vmem:[#allocation2 + $0x40] sm:$0xff]
    %v128 = vld [vmem:[#allocation2 + $0x48] sm:$0xff]
    %v129 = vld [vmem:[#allocation2 + $0x50] sm:$0xff]
    %v130 = vld [vmem:[#allocation2 + $0x58] sm:$0xff]
    %v131 = vld [vmem:[#allocation2 + $0xe0] sm:$0xff]
    %v132 = vld [vmem:[#allocation2 + $0xe8] sm:$0xff]
    %vm133 = vcmask 261120
    %v135 = vsel %vm133, %v125, 0
    %v138 = vsel %vm133, %v126, 0
    %140 = vmatprep.subr.mxu0 0.0
    %141 = vmatpush1.msra.mxu0 %v127
    %142 = vmatprep.subr.mxu0 0.0
    %143 = vmatpush1.msra.mxu0 %v128
    %144 = vmatprep.subr.mxu0 0.0
    %145 = vmatpush1.msra.mxu0 %v129
    %146 = vmatprep.subr.mxu0 0.0
    %147 = vmatpush1.msra.mxu0 %v130
    %148 = vmatprep.subr.mxu0 0.0
    %149 = vmatpush1.msra.mxu0 0.0
    %150 = vmatprep.subr.mxu0 0.0
    %151 = vmatpush1.msra.mxu0 0.0
    %152 = vmatprep.subr.mxu0 0.0
    %153 = vmatpush1.msra.mxu0 0.0
    %154 = vmatprep.subr.mxu0 0.0
    %155 = vmatpush1.msra.mxu0 0.0
    %156 = vmatprep.subr.mxu0 0.0
    %157 = vmatpush1.msra.mxu0 0.0
    %158 = vmatprep.subr.mxu0 0.0
    %159 = vmatpush1.msra.mxu0 0.0
    %160 = vmatprep.subr.mxu0 0.0
    %161 = vmatpush1.msra.mxu0 0.0
    %162 = vmatprep.subr.mxu0 0.0
    %163 = vmatpush1.msra.mxu0 0.0
    %164 = vmatprep.subr.mxu0 0.0
    %165 = vmatpush1.msra.mxu0 0.0
    %166 = vmatprep.subr.mxu0 0.0
    %167 = vmatpush1.msra.mxu0 0.0
    %168 = vmatprep.subr.mxu0 0.0
    %169 = vmatpush1.msra.mxu0 0.0
    %170 = vmatprep.subr.mxu0 0.0
    %171 = vmatpush1.msra.mxu0 0.0
    %172 = vmatprep.subr.mxu0 0.0
    %173 = vmatpush1.msra.mxu0 0.0
    %174 = vmatprep.subr.mxu0 0.0
    %175 = vmatpush1.msra.mxu0 0.0
    %176 = vmatprep.subr.mxu0 0.0
    %177 = vmatpush1.msra.mxu0 0.0
    %178 = vmatprep.subr.mxu0 0.0
    %179 = vmatpush1.msra.mxu0 0.0
    %180 = vmatprep.subr.mxu0 0.0
    %181 = vmatpush1.msra.mxu0 0.0
    %182 = vmatprep.subr.mxu0 0.0
    %183 = vmatpush1.msra.mxu0 0.0
    %184 = vmatprep.subr.mxu0 0.0
    %185 = vmatpush1.msra.mxu0 0.0
    %186 = vmatprep.subr.mxu0 0.0
    %187 = vmatpush1.msra.mxu0 0.0
    %188 = vmatprep.subr.mxu0 0.0
    %189 = vmatpush1.msra.mxu0 0.0
    %190 = vmatprep.subr.mxu0 0.0
    %191 = vmatpush1.msra.mxu0 0.0
    %192 = vmatprep.subr.mxu0 0.0
    %193 = vmatpush1.msra.mxu0 0.0
    %194 = vmatprep.subr.mxu0 0.0
    %195 = vmatpush1.msra.mxu0 0.0
    %196 = vmatprep.subr.mxu0 0.0
    %197 = vmatpush1.msra.mxu0 0.0
    %198 = vmatprep.subr.mxu0 0.0
    %199 = vmatpush1.msra.mxu0 0.0
    %200 = vmatprep.subr.mxu0 0.0
    %201 = vmatpush1.msra.mxu0 0.0
    %202 = vmatprep.subr.mxu0 0.0
    %203 = vmatpush1.msra.mxu0 0.0
    %204 = vmatprep.mubr.f32.mxu0 0.0
    %205 = vmatmul.mubr.f32.gmra.mrb[0].mxu0 %v135
    %v206 = vpop.f32.mrb[0].mxu0
    %v207 = vadd.f32 %v131, %v206
    %v208 = vpop.f32.mrb[0].mxu0
    %209 = vmatprep.mubr.f32.mxu0 0.0
    %210 = vmatmul.mubr.f32.gmra.mrb[0].mxu0 %v138
    %v211 = vpop.f32.mrb[0].mxu0
    %v212 = vadd.f32 %v132, %v211
    %v213 = vpop.f32.mrb[0].mxu0
    %214 = vdwg.mxu0
    %v215 = vmax.f32 %v207, 0.0
    %v216 = vmax.f32 %v212, 0.0
    %v217 = vld [vmem:[#allocation2 + $0x60] sm:$0xff]
    %v218 = vld [vmem:[#allocation2 + $0x68] sm:$0xff]
    %v219 = vld [vmem:[#allocation2 + $0x70] sm:$0xff]
    %v220 = vld [vmem:[#allocation2 + $0x78] sm:$0xff]
    %v221 = vld [vmem:[#allocation2 + $0xf0] sm:$0xff]
    %v222 = vld [vmem:[#allocation2 + $0xf8] sm:$0xff]
    %v224 = vsel %vm133, %v215, 0
    %v227 = vsel %vm133, %v216, 0
    %229 = vmatprep.subr.mxu0 0.0
    %230 = vmatpush1.msra.mxu0 %v217
    %231 = vmatprep.subr.mxu0 0.0
    %232 = vmatpush1.msra.mxu0 %v218
    %233 = vmatprep.subr.mxu0 0.0
    %234 = vmatpush1.msra.mxu0 %v219
    %235 = vmatprep.subr.mxu0 0.0
    %236 = vmatpush1.msra.mxu0 %v220
    %237 = vmatprep.subr.mxu0 0.0
    %238 = vmatpush1.msra.mxu0 0.0
    %239 = vmatprep.subr.mxu0 0.0
    %240 = vmatpush1.msra.mxu0 0.0
    %241 = vmatprep.subr.mxu0 0.0
    %242 = vmatpush1.msra.mxu0 0.0
    %243 = vmatprep.subr.mxu0 0.0
    %244 = vmatpush1.msra.mxu0 0.0
    %245 = vmatprep.subr.mxu0 0.0
    %246 = vmatpush1.msra.mxu0 0.0
    %247 = vmatprep.subr.mxu0 0.0
    %248 = vmatpush1.msra.mxu0 0.0
    %249 = vmatprep.subr.mxu0 0.0
    %250 = vmatpush1.msra.mxu0 0.0
    %251 = vmatprep.subr.mxu0 0.0
    %252 = vmatpush1.msra.mxu0 0.0
    %253 = vmatprep.subr.mxu0 0.0
    %254 = vmatpush1.msra.mxu0 0.0
    %255 = vmatprep.subr.mxu0 0.0
    %256 = vmatpush1.msra.mxu0 0.0
    %257 = vmatprep.subr.mxu0 0.0
    %258 = vmatpush1.msra.mxu0 0.0
    %259 = vmatprep.subr.mxu0 0.0
    %260 = vmatpush1.msra.mxu0 0.0
    %261 = vmatprep.subr.mxu0 0.0
    %262 = vmatpush1.msra.mxu0 0.0
    %263 = vmatprep.subr.mxu0 0.0
    %264 = vmatpush1.msra.mxu0 0.0
    %265 = vmatprep.subr.mxu0 0.0
    %266 = vmatpush1.msra.mxu0 0.0
    %267 = vmatprep.subr.mxu0 0.0
    %268 = vmatpush1.msra.mxu0 0.0
    %269 = vmatprep.subr.mxu0 0.0
    %270 = vmatpush1.msra.mxu0 0.0
    %271 = vmatprep.subr.mxu0 0.0
    %272 = vmatpush1.msra.mxu0 0.0
    %273 = vmatprep.subr.mxu0 0.0
    %274 = vmatpush1.msra.mxu0 0.0
    %275 = vmatprep.subr.mxu0 0.0
    %276 = vmatpush1.msra.mxu0 0.0
    %277 = vmatprep.subr.mxu0 0.0
    %278 = vmatpush1.msra.mxu0 0.0
    %279 = vmatprep.subr.mxu0 0.0
    %280 = vmatpush1.msra.mxu0 0.0
    %281 = vmatprep.subr.mxu0 0.0
    %282 = vmatpush1.msra.mxu0 0.0
    %283 = vmatprep.subr.mxu0 0.0
    %284 = vmatpush1.msra.mxu0 0.0
    %285 = vmatprep.subr.mxu0 0.0
    %286 = vmatpush1.msra.mxu0 0.0
    %287 = vmatprep.subr.mxu0 0.0
    %288 = vmatpush1.msra.mxu0 0.0
    %289 = vmatprep.subr.mxu0 0.0
    %290 = vmatpush1.msra.mxu0 0.0
    %291 = vmatprep.subr.mxu0 0.0
    %292 = vmatpush1.msra.mxu0 0.0
    %293 = vmatprep.mubr.f32.mxu0 0.0
    %294 = vmatmul.mubr.f32.gmra.mrb[0].mxu0 %v224
    %v295 = vpop.f32.mrb[0].mxu0
    %v296 = vadd.f32 %v221, %v295
    %v297 = vpop.f32.mrb[0].mxu0
    %298 = vmatprep.mubr.f32.mxu0 0.0
    %299 = vmatmul.mubr.f32.gmra.mrb[0].mxu0 %v227
    %v300 = vpop.f32.mrb[0].mxu0
    %v301 = vadd.f32 %v222, %v300
    %v302 = vpop.f32.mrb[0].mxu0
    %303 = vdwg.mxu0
    %v304 = vld [vmem:[#allocation2 + $0x80] sm:$0xff]
    %v305 = vld [vmem:[%s2] sm:$0xff]
    %v306 = vld [vmem:[#allocation2 + $0x88] sm:$0xf]
    %vm307 = vcmask 31744
    %v309 = vsel %vm307, %v305, 0
    %vm311 = vcmask 1043456
    %v313 = vsel %vm311, %v306, 0
    %315 = vmatprep.subr.mxu0 0.0
    %316 = vmatpush1.msra.mxu0 %v313
    %317 = vmatprep.subr.mxu0 0.0
    %318 = vmatpush1.msra.mxu0 0.0
    %319 = vmatprep.subr.mxu0 0.0
    %320 = vmatpush1.msra.mxu0 0.0
    %321 = vmatprep.subr.mxu0 0.0
    %322 = vmatpush1.msra.mxu0 0.0
    %323 = vmatprep.subr.mxu0 0.0
    %324 = vmatpush1.msra.mxu0 0.0
    %325 = vmatprep.subr.mxu0 0.0
    %326 = vmatpush1.msra.mxu0 0.0
    %327 = vmatprep.subr.mxu0 0.0
    %328 = vmatpush1.msra.mxu0 0.0
    %329 = vmatprep.subr.mxu0 0.0
    %330 = vmatpush1.msra.mxu0 0.0
    %331 = vmatprep.subr.mxu0 0.0
    %332 = vmatpush1.msra.mxu0 0.0
    %333 = vmatprep.subr.mxu0 0.0
    %334 = vmatpush1.msra.mxu0 0.0
    %335 = vmatprep.subr.mxu0 0.0
    %336 = vmatpush1.msra.mxu0 0.0
    %337 = vmatprep.subr.mxu0 0.0
    %338 = vmatpush1.msra.mxu0 0.0
    %339 = vmatprep.subr.mxu0 0.0
    %340 = vmatpush1.msra.mxu0 0.0
    %341 = vmatprep.subr.mxu0 0.0
    %342 = vmatpush1.msra.mxu0 0.0
    %343 = vmatprep.subr.mxu0 0.0
    %344 = vmatpush1.msra.mxu0 0.0
    %345 = vmatprep.subr.mxu0 0.0
    %346 = vmatpush1.msra.mxu0 0.0
    %347 = vmatprep.subr.mxu0 0.0
    %348 = vmatpush1.msra.mxu0 0.0
    %349 = vmatprep.subr.mxu0 0.0
    %350 = vmatpush1.msra.mxu0 0.0
    %351 = vmatprep.subr.mxu0 0.0
    %352 = vmatpush1.msra.mxu0 0.0
    %353 = vmatprep.subr.mxu0 0.0
    %354 = vmatpush1.msra.mxu0 0.0
    %355 = vmatprep.subr.mxu0 0.0
    %356 = vmatpush1.msra.mxu0 0.0
    %357 = vmatprep.subr.mxu0 0.0
    %358 = vmatpush1.msra.mxu0 0.0
    %359 = vmatprep.subr.mxu0 0.0
    %360 = vmatpush1.msra.mxu0 0.0
    %361 = vmatprep.subr.mxu0 0.0
    %362 = vmatpush1.msra.mxu0 0.0
    %363 = vmatprep.subr.mxu0 0.0
    %364 = vmatpush1.msra.mxu0 0.0
    %365 = vmatprep.subr.mxu0 0.0
    %366 = vmatpush1.msra.mxu0 0.0
    %367 = vmatprep.subr.mxu0 0.0
    %368 = vmatpush1.msra.mxu0 0.0
    %369 = vmatprep.subr.mxu0 0.0
    %370 = vmatpush1.msra.mxu0 0.0
    %371 = vmatprep.subr.mxu0 0.0
    %372 = vmatpush1.msra.mxu0 0.0
    %373 = vmatprep.subr.mxu0 0.0
    %374 = vmatpush1.msra.mxu0 0.0
    %375 = vmatprep.subr.mxu0 0.0
    %376 = vmatpush1.msra.mxu0 0.0
    %377 = vmatprep.subr.mxu0 0.0
    %378 = vmatpush1.msra.mxu0 0.0
    %379 = vmatprep.mubr.f32.mxu0 0.0
    %380 = vmatmul.mubr.f32.gmra.mrb[0].mxu0 %v309
    %v381 = vpop.f32.mrb[0].mxu0
    %v382 = vadd.f32 0.0, %v381
    %v383 = vpop.f32.mrb[0].mxu0
    %384 = vdwg.mxu0
    %vm385 = vcmask 64512
    %v387 = vsel %vm385, %v296, 0
    %389 = vmatprep.subr.mxu0 0.0
    %390 = vmatpush1.msra.mxu0 %v304
    %391 = vmatprep.subr.mxu0 0.0
    %392 = vmatpush1.msra.mxu0 0.0
    %393 = vmatprep.subr.mxu0 0.0
    %394 = vmatpush1.msra.mxu0 0.0
    %395 = vmatprep.subr.mxu0 0.0
    %396 = vmatpush1.msra.mxu0 0.0
    %397 = vmatprep.subr.mxu0 0.0
    %398 = vmatpush1.msra.mxu0 0.0
    %399 = vmatprep.subr.mxu0 0.0
    %400 = vmatpush1.msra.mxu0 0.0
    %401 = vmatprep.subr.mxu0 0.0
    %402 = vmatpush1.msra.mxu0 0.0
    %403 = vmatprep.subr.mxu0 0.0
    %404 = vmatpush1.msra.mxu0 0.0
    %405 = vmatprep.subr.mxu0 0.0
    %406 = vmatpush1.msra.mxu0 0.0
    %407 = vmatprep.subr.mxu0 0.0
    %408 = vmatpush1.msra.mxu0 0.0
    %409 = vmatprep.subr.mxu0 0.0
    %410 = vmatpush1.msra.mxu0 0.0
    %411 = vmatprep.subr.mxu0 0.0
    %412 = vmatpush1.msra.mxu0 0.0
    %413 = vmatprep.subr.mxu0 0.0
    %414 = vmatpush1.msra.mxu0 0.0
    %415 = vmatprep.subr.mxu0 0.0
    %416 = vmatpush1.msra.mxu0 0.0
    %417 = vmatprep.subr.mxu0 0.0
    %418 = vmatpush1.msra.mxu0 0.0
    %419 = vmatprep.subr.mxu0 0.0
    %420 = vmatpush1.msra.mxu0 0.0
    %421 = vmatprep.subr.mxu0 0.0
    %422 = vmatpush1.msra.mxu0 0.0
    %423 = vmatprep.subr.mxu0 0.0
    %424 = vmatpush1.msra.mxu0 0.0
    %425 = vmatprep.subr.mxu0 0.0
    %426 = vmatpush1.msra.mxu0 0.0
    %427 = vmatprep.subr.mxu0 0.0
    %428 = vmatpush1.msra.mxu0 0.0
    %429 = vmatprep.subr.mxu0 0.0
    %430 = vmatpush1.msra.mxu0 0.0
    %431 = vmatprep.subr.mxu0 0.0
    %432 = vmatpush1.msra.mxu0 0.0
    %433 = vmatprep.subr.mxu0 0.0
    %434 = vmatpush1.msra.mxu0 0.0
    %435 = vmatprep.subr.mxu0 0.0
    %436 = vmatpush1.msra.mxu0 0.0
    %437 = vmatprep.subr.mxu0 0.0
    %438 = vmatpush1.msra.mxu0 0.0
    %439 = vmatprep.subr.mxu0 0.0
    %440 = vmatpush1.msra.mxu0 0.0
    %441 = vmatprep.subr.mxu0 0.0
    %442 = vmatpush1.msra.mxu0 0.0
    %443 = vmatprep.subr.mxu0 0.0
    %444 = vmatpush1.msra.mxu0 0.0
    %445 = vmatprep.subr.mxu0 0.0
    %446 = vmatpush1.msra.mxu0 0.0
    %447 = vmatprep.subr.mxu0 0.0
    %448 = vmatpush1.msra.mxu0 0.0
    %449 = vmatprep.subr.mxu0 0.0
    %450 = vmatpush1.msra.mxu0 0.0
    %451 = vmatprep.subr.mxu0 0.0
    %452 = vmatpush1.msra.mxu0 0.0
    %453 = vmatprep.mubr.f32.mxu0 0.0
    %454 = vmatmul.mubr.f32.gmra.mrb[0].mxu0 %v387
    %v455 = vpop.f32.mrb[0].mxu0
    %v456 = vadd.f32 %v382, %v455
    %v457 = vpop.f32.mrb[0].mxu0
    %458 = vdwg.mxu0
    %v459 = vld [vmem:[#allocation2 + $0x100] sm:$0xff]
    %v460 = vadd.f32 %v456, %v459
    %v461 = vmax.f32 %v460, 0.0
    %v462 = vld [vmem:[#allocation2 + $0x90] sm:$0xff]
    %v463 = vld [vmem:[#allocation2 + $0x98] sm:$0xff]
    %v464 = vld [vmem:[#allocation2 + $0xa0] sm:$0xff]
    %v465 = vld [vmem:[#allocation2 + $0xa8] sm:$0xff]
    %v466 = vld [vmem:[#allocation2 + $0x110] sm:$0xff]
    %v468 = vsel %vm133, %v461, 0
    %470 = vmatprep.subr.mxu0 0.0
    %471 = vmatpush1.msra.mxu0 %v462
    %472 = vmatprep.subr.mxu0 0.0
    %473 = vmatpush1.msra.mxu0 %v463
    %474 = vmatprep.subr.mxu0 0.0
    %475 = vmatpush1.msra.mxu0 %v464
    %476 = vmatprep.subr.mxu0 0.0
    %477 = vmatpush1.msra.mxu0 %v465
    %478 = vmatprep.subr.mxu0 0.0
    %479 = vmatpush1.msra.mxu0 0.0
    %480 = vmatprep.subr.mxu0 0.0
    %481 = vmatpush1.msra.mxu0 0.0
    %482 = vmatprep.subr.mxu0 0.0
    %483 = vmatpush1.msra.mxu0 0.0
    %484 = vmatprep.subr.mxu0 0.0
    %485 = vmatpush1.msra.mxu0 0.0
    %486 = vmatprep.subr.mxu0 0.0
    %487 = vmatpush1.msra.mxu0 0.0
    %488 = vmatprep.subr.mxu0 0.0
    %489 = vmatpush1.msra.mxu0 0.0
    %490 = vmatprep.subr.mxu0 0.0
    %491 = vmatpush1.msra.mxu0 0.0
    %492 = vmatprep.subr.mxu0 0.0
    %493 = vmatpush1.msra.mxu0 0.0
    %494 = vmatprep.subr.mxu0 0.0
    %495 = vmatpush1.msra.mxu0 0.0
    %496 = vmatprep.subr.mxu0 0.0
    %497 = vmatpush1.msra.mxu0 0.0
    %498 = vmatprep.subr.mxu0 0.0
    %499 = vmatpush1.msra.mxu0 0.0
    %500 = vmatprep.subr.mxu0 0.0
    %501 = vmatpush1.msra.mxu0 0.0
    %502 = vmatprep.subr.mxu0 0.0
    %503 = vmatpush1.msra.mxu0 0.0
    %504 = vmatprep.subr.mxu0 0.0
    %505 = vmatpush1.msra.mxu0 0.0
    %506 = vmatprep.subr.mxu0 0.0
    %507 = vmatpush1.msra.mxu0 0.0
    %508 = vmatprep.subr.mxu0 0.0
    %509 = vmatpush1.msra.mxu0 0.0
    %510 = vmatprep.subr.mxu0 0.0
    %511 = vmatpush1.msra.mxu0 0.0
    %512 = vmatprep.subr.mxu0 0.0
    %513 = vmatpush1.msra.mxu0 0.0
    %514 = vmatprep.subr.mxu0 0.0
    %515 = vmatpush1.msra.mxu0 0.0
    %516 = vmatprep.subr.mxu0 0.0
    %517 = vmatpush1.msra.mxu0 0.0
    %518 = vmatprep.subr.mxu0 0.0
    %519 = vmatpush1.msra.mxu0 0.0
    %520 = vmatprep.subr.mxu0 0.0
    %521 = vmatpush1.msra.mxu0 0.0
    %522 = vmatprep.subr.mxu0 0.0
    %523 = vmatpush1.msra.mxu0 0.0
    %524 = vmatprep.subr.mxu0 0.0
    %525 = vmatpush1.msra.mxu0 0.0
    %526 = vmatprep.subr.mxu0 0.0
    %527 = vmatpush1.msra.mxu0 0.0
    %528 = vmatprep.subr.mxu0 0.0
    %529 = vmatpush1.msra.mxu0 0.0
    %530 = vmatprep.subr.mxu0 0.0
    %531 = vmatpush1.msra.mxu0 0.0
    %532 = vmatprep.subr.mxu0 0.0
    %533 = vmatpush1.msra.mxu0 0.0
    %534 = vmatprep.mubr.f32.mxu0 0.0
    %535 = vmatmul.mubr.f32.gmra.mrb[0].mxu0 %v468
    %v536 = vpop.f32.mrb[0].mxu0
    %v537 = vadd.f32 %v466, %v536
    %v538 = vpop.f32.mrb[0].mxu0
    %539 = vdwg.mxu0
    %v540 = vmax.f32 %v537, 0.0
    %v541 = vld [vmem:[#allocation2 + $0xb0] sm:$0xff]
    %v542 = vld [vmem:[#allocation2 + $0xb8] sm:$0xff]
    %v543 = vld [vmem:[#allocation2 + $0xc0] sm:$0xff]
    %v544 = vld [vmem:[#allocation2 + $0xc8] sm:$0xff]
    %v545 = vld [vmem:[#allocation2 + $0x120] sm:$0xff]
    %v547 = vsel %vm133, %v540, 0
    %549 = vmatprep.subr.mxu0 0.0
    %550 = vmatpush1.msra.mxu0 %v541
    %551 = vmatprep.subr.mxu0 0.0
    %552 = vmatpush1.msra.mxu0 %v542
    %553 = vmatprep.subr.mxu0 0.0
    %554 = vmatpush1.msra.mxu0 %v543
    %555 = vmatprep.subr.mxu0 0.0
    %556 = vmatpush1.msra.mxu0 %v544
    %557 = vmatprep.subr.mxu0 0.0
    %558 = vmatpush1.msra.mxu0 0.0
    %559 = vmatprep.subr.mxu0 0.0
    %560 = vmatpush1.msra.mxu0 0.0
    %561 = vmatprep.subr.mxu0 0.0
    %562 = vmatpush1.msra.mxu0 0.0
    %563 = vmatprep.subr.mxu0 0.0
    %564 = vmatpush1.msra.mxu0 0.0
    %565 = vmatprep.subr.mxu0 0.0
    %566 = vmatpush1.msra.mxu0 0.0
    %567 = vmatprep.subr.mxu0 0.0
    %568 = vmatpush1.msra.mxu0 0.0
    %569 = vmatprep.subr.mxu0 0.0
    %570 = vmatpush1.msra.mxu0 0.0
    %571 = vmatprep.subr.mxu0 0.0
    %572 = vmatpush1.msra.mxu0 0.0
    %573 = vmatprep.subr.mxu0 0.0
    %574 = vmatpush1.msra.mxu0 0.0
    %575 = vmatprep.subr.mxu0 0.0
    %576 = vmatpush1.msra.mxu0 0.0
    %577 = vmatprep.subr.mxu0 0.0
    %578 = vmatpush1.msra.mxu0 0.0
    %579 = vmatprep.subr.mxu0 0.0
    %580 = vmatpush1.msra.mxu0 0.0
    %581 = vmatprep.subr.mxu0 0.0
    %582 = vmatpush1.msra.mxu0 0.0
    %583 = vmatprep.subr.mxu0 0.0
    %584 = vmatpush1.msra.mxu0 0.0
    %585 = vmatprep.subr.mxu0 0.0
    %586 = vmatpush1.msra.mxu0 0.0
    %587 = vmatprep.subr.mxu0 0.0
    %588 = vmatpush1.msra.mxu0 0.0
    %589 = vmatprep.subr.mxu0 0.0
    %590 = vmatpush1.msra.mxu0 0.0
    %591 = vmatprep.subr.mxu0 0.0
    %592 = vmatpush1.msra.mxu0 0.0
    %593 = vmatprep.subr.mxu0 0.0
    %594 = vmatpush1.msra.mxu0 0.0
    %595 = vmatprep.subr.mxu0 0.0
    %596 = vmatpush1.msra.mxu0 0.0
    %597 = vmatprep.subr.mxu0 0.0
    %598 = vmatpush1.msra.mxu0 0.0
    %599 = vmatprep.subr.mxu0 0.0
    %600 = vmatpush1.msra.mxu0 0.0
    %601 = vmatprep.subr.mxu0 0.0
    %602 = vmatpush1.msra.mxu0 0.0
    %603 = vmatprep.subr.mxu0 0.0
    %604 = vmatpush1.msra.mxu0 0.0
    %605 = vmatprep.subr.mxu0 0.0
    %606 = vmatpush1.msra.mxu0 0.0
    %607 = vmatprep.subr.mxu0 0.0
    %608 = vmatpush1.msra.mxu0 0.0
    %609 = vmatprep.subr.mxu0 0.0
    %610 = vmatpush1.msra.mxu0 0.0
    %611 = vmatprep.subr.mxu0 0.0
    %612 = vmatpush1.msra.mxu0 0.0
    %613 = vmatprep.mubr.f32.mxu0 0.0
    %614 = vmatmul.mubr.f32.gmra.mrb[0].mxu0 %v547
    %v615 = vpop.f32.mrb[0].mxu0
    %v616 = vadd.f32 %v545, %v615
    %v617 = vpop.f32.mrb[0].mxu0
    %618 = vdwg.mxu0
    %v619 = vadd.f32 %v616, %v296
    %v620 = vmul.f32 %v616, 1.442695
    %v621 = vpow.pop %v620
    %623 = vrot.lane.b32.xlu0 %v619, 8
    %v624 = vpop.permute.xlu0 %623
    %627 = vrot.lane.b32.xlu0 %v621, 8
    %v628 = vpop.permute.xlu0 %627
    %631 = vrot.lane.b32.xlu0 %v301, 24
    %v632 = vpop.permute.xlu0 %631
    %v634 = vsel %vm385, %v296, %v624
    %vm635 = vcmask 130048
    %v636 = vsel %vm635, %v634, %v628
    %vm637 = vcmask 195584
    %v638 = vsel %vm637, %v636, %v632
    %v639 = vsel %vm133, %v638, 0.0
    %640 = vst [vmem:[%s4] sm:$0xff] %v639
    // Predicated region
    $region22: #{forward.1} parent=1 // pred_check
      _
    $region23: #{forward.1} parent=1 // pred_check_branch
      %642 = sbr.rel (0) target = $region25
    $region24: #{forward.1} parent=1 // pred_region
      _
    $region25: #{forward.1} parent=1 // pred_fallthru
      _
    // Predicated region
    $region26: #{forward.1} parent=1 // pred_check
      _
    $region27: #{forward.1} parent=1 // pred_check_branch
      %644 = sbr.rel (0) target = $region29
    $region28: #{forward.1} parent=1 // pred_region
      _
    $region29: #{forward.1} parent=1 // pred_fallthru
      _
    %645 = vsyncpa [#allocation3], 1

</llo_original>
